<compile_context>
chip_gen: v6e
topology: v6e:2x2x1
jax: 0.10.0
libtpu: 0.0.40
codegen_flags: <defaults>
</compile_context>

<pallas_src>
import functools

import jax
import jax.numpy as jnp
import numpy as np
from jax.experimental import pallas as pl
from jax.experimental.pallas import tpu as pltpu


def tcn_block_kernel(mask_ref, xp_ref, xres_ref, w1_ref, gamma_ref, beta_ref,
                     alpha_ref, wres_ref, o_ref, *, kernel_size, dilation, inv_count):
    """Fused TCNBlock forward on batch-flattened (lane-major) 2D slabs.

    mask_ref : (1, NS)            f32, 1.0 on lanes that map to real output positions
    xp_ref   : (C_in, NS + halo)  conv1 input, batches laid out with lane stride S
    xres_ref : (C_in, NS)         residual input, already center-cropped, f32
    w1_ref   : (C_out, K*C_in)    conv1 weight, w1[o, k*C_in + i] = conv_w[o, i, k]
    gamma_ref, beta_ref, alpha_ref : (C_out, 1) f32
    wres_ref : (C_in, r, 1)       f32, grouped 1x1 residual conv weights
    o_ref    : (C_out, NS)        lane-dense output slab
    """
    C_out, KC = w1_ref.shape
    C_in = KC // kernel_size
    r = C_out // C_in
    NS = o_ref.shape[-1]
    d = dilation
    eps = 1e-5

    # ---- phase 1: dilated conv over the WHOLE batch as one deep MXU contraction ----
    # K shifted lane-slices (hoisted: K total, independent of batch size) stacked along
    # the contraction dim -> single (C_out, K*C_in) x (K*C_in, NS) matmul, f32 accum.
    cols = jnp.concatenate(
        [xp_ref[:, k * d: k * d + NS] for k in range(kernel_size)], axis=0)   # (K*C_in, NS)
    y = jnp.dot(w1_ref[...], cols, preferred_element_type=jnp.float32)        # (C_out, NS) f32

    # Lanes past each batch's valid length have windows overlapping padding/garbage;
    # zero them once so all following reductions are unmasked.
    y = y * mask_ref[...]

    # ---- phase 2: BN batch stats (biased, over N and valid L) in a single pass ----
    s1 = jnp.sum(y, axis=1, keepdims=True)                                    # (C_out, 1)
    s2 = jnp.sum(y * y, axis=1, keepdims=True)                                # (C_out, 1)
    mean = s1 * inv_count
    var = jnp.maximum(s2 * inv_count - mean * mean, 0.0)                      # f32, clamped
    scale = gamma_ref[...] * jax.lax.rsqrt(var + eps)                         # rsqrt -> EUP
    shift = beta_ref[...] - mean * scale

    # ---- phase 3: BN apply (1 FMA) + PReLU + grouped-1x1 residual + single store ----
    y = y * scale + shift
    y = jnp.where(y > 0, y, alpha_ref[...] * y)

    # groups=in_ch 1x1 conv: output channel i*r + j = wres[i, j] * input channel i.
    res = (xres_ref[...][:, None, :] * wres_ref[...]).reshape(C_out, NS)      # (C_out, NS)

    o_ref[...] = (y + res).astype(o_ref.dtype)


def tcn_block(x, params, *, kernel_size=3, padding=0, dilation=1, mxu_dtype=None):
    """Wrapper: layout plumbing (batch->lane flattening, weight reshapes) + pallas_call."""
    N, C_in, L = x.shape
    w1 = params['conv1_w']                         # (C_out, C_in, K)  PyTorch Conv1d layout
    C_out, C_in_w, K = w1.shape
    assert K == kernel_size and C_in_w == C_in
    assert C_out % C_in == 0, "res conv (groups=in_ch) requires out_ch % in_ch == 0"
    r = C_out // C_in

    halo = dilation * (kernel_size - 1)
    L_out = L + 2 * padding - halo
    assert 0 < L_out <= L

    if mxu_dtype is None:
        mxu_dtype = x.dtype                        # set jnp.bfloat16 on v6e/v7x for MXU peak

    # Per-batch lane segment: multiple of 128 and >= L_out + halo so every dilated tap of
    # a valid output position stays inside the owning batch's segment.
    S = pl.cdiv(L_out + halo, 128) * 128
    NS = N * S

    # conv input: user zero padding, right pad each batch to S, flatten batches along the
    # lane axis (stride S), plus `halo` trailing zeros so shifted slices stay in bounds.
    xp = jnp.pad(x, ((0, 0), (0, 0), (padding, S - L - padding)))             # (N, C_in, S)
    xflat = jnp.transpose(xp, (1, 0, 2)).reshape(C_in, NS)
    xflat = jnp.pad(xflat, ((0, 0), (0, halo))).astype(mxu_dtype)             # (C_in, NS+halo)

    # residual input: center-crop BEFORE any compute, same flat segment layout, kept f32.
    start = (L - L_out) // 2
    xr = jnp.pad(x[:, :, start:start + L_out], ((0, 0), (0, 0), (0, S - L_out)))
    xres = jnp.transpose(xr, (1, 0, 2)).reshape(C_in, NS).astype(jnp.float32)

    # valid-lane mask: lane n*S + l is valid iff l < L_out.
    mask = ((jnp.arange(NS) % S) < L_out).astype(jnp.float32).reshape(1, NS)

    # weights: w1_flat[o, k*C_in + i] = conv1_w[o, i, k]  (matches im2col row order).
    w1_flat = jnp.transpose(w1, (0, 2, 1)).reshape(C_out, K * C_in).astype(mxu_dtype)
    gamma = params['bn_gamma'].reshape(C_out, 1).astype(jnp.float32)
    beta = params['bn_beta'].reshape(C_out, 1).astype(jnp.float32)
    alpha = params['prelu_a'].reshape(C_out, 1).astype(jnp.float32)
    # grouped 1x1 res conv: output channel i*r + j scales input channel i by wres3[i, j].
    wres3 = params['res_w'].reshape(C_out).reshape(C_in, r, 1).astype(jnp.float32)

    inv_count = 1.0 / float(N * L_out)
    kernel = functools.partial(tcn_block_kernel, kernel_size=K, dilation=dilation,
                               inv_count=inv_count)

    operands = (mask, xflat, xres, w1_flat, gamma, beta, alpha, wres3)
    in_bytes = sum(int(a.size) * a.dtype.itemsize for a in operands)
    out_bytes = C_out * NS * x.dtype.itemsize
    flops = 2 * C_out * K * C_in * NS + 10 * C_out * NS
    # Derive the VMEM budget from the actual resident buffers (+ headroom); cap at
    # 48 MiB so the same limit is safe on v7x (64 MiB physical) as well as v5e/v6e.
    vmem_limit = int(min(max(2 * (in_bytes + out_bytes) + (1 << 20), 4 << 20), 48 << 20))

    out_flat = pl.pallas_call(
        kernel,
        out_shape=jax.ShapeDtypeStruct((C_out, NS), x.dtype),
        in_specs=[pl.BlockSpec(memory_space=pltpu.MemorySpace.VMEM)] * len(operands),
        out_specs=pl.BlockSpec(memory_space=pltpu.MemorySpace.VMEM),
        compiler_params=pltpu.CompilerParams(vmem_limit_bytes=vmem_limit),
        cost_estimate=pl.CostEstimate(flops=flops, transcendentals=C_out,
                                      bytes_accessed=in_bytes + out_bytes),
    )(*operands)

    # un-flatten the batch and drop the lane padding (pure layout plumbing).
    return out_flat.reshape(C_out, N, S).transpose(1, 0, 2)[:, :, :L_out]


def tcn_block_ref(x, params, *, kernel_size=3, padding=0, dilation=1):
    """Pure-JAX reference mirroring the PyTorch forward (training-mode BN, p=None)."""
    N, C_in, L = x.shape
    w1 = params['conv1_w'].astype(jnp.float32)
    C_out = w1.shape[0]
    xp = jnp.pad(x, ((0, 0), (0, 0), (padding, padding)))
    y = jax.lax.conv_general_dilated(
        xp.astype(jnp.float32), w1, window_strides=(1,), padding='VALID',
        rhs_dilation=(dilation,), dimension_numbers=('NCH', 'OIH', 'NCH'))
    mean = jnp.mean(y, axis=(0, 2), keepdims=True)
    var = jnp.mean((y - mean) ** 2, axis=(0, 2), keepdims=True)
    y = (y - mean) / jnp.sqrt(var + 1e-5)
    y = y * params['bn_gamma'][None, :, None] + params['bn_beta'][None, :, None]
    a = params['prelu_a'][None, :, None]
    y = jnp.where(y > 0, y, a * y)
    r = C_out // C_in
    x_res = jnp.repeat(x, r, axis=1).astype(jnp.float32) * params['res_w'].reshape(1, C_out, 1)
    L_out = y.shape[-1]
    start = (L - L_out) // 2
    x_res = x_res[:, :, start:start + L_out]
    return (y + x_res).astype(x.dtype)


if __name__ == "__main__":
    key = jax.random.PRNGKey(0)
    N, C_in, C_out, K = 2, 4, 8, 3
    k1, k2, k3, k4, k5 = jax.random.split(key, 5)

    params = {
        'conv1_w': jax.random.normal(k2, (C_out, C_in, K), jnp.float32) * 0.3,   # Conv1d weight
        'res_w':   jax.random.normal(k3, (C_out, 1, 1), jnp.float32) * 0.3,      # grouped 1x1 conv
        'bn_gamma': 1.0 + 0.1 * jax.random.normal(k4, (C_out,), jnp.float32),    # BN weight
        'bn_beta':  0.1 * jax.random.normal(k5, (C_out,), jnp.float32),          # BN bias
        'prelu_a':  jnp.full((C_out,), 0.25, jnp.float32),                       # PReLU init
    }

    # config 1: padding=0, dilation=1
    x1 = jax.random.normal(k1, (N, C_in, 16), jnp.float32)
    out1 = jax.block_until_ready(tcn_block(x1, params, kernel_size=K, padding=0, dilation=1))
    ref1 = tcn_block_ref(x1, params, kernel_size=K, padding=0, dilation=1)
    assert out1.shape == (N, C_out, 16 - (K - 1))
    np.testing.assert_allclose(np.asarray(out1), np.asarray(ref1), rtol=1e-3, atol=1e-3)

    # config 2: padding=1, dilation=2
    x2 = jax.random.normal(k1, (N, C_in, 20), jnp.float32)
    out2 = jax.block_until_ready(tcn_block(x2, params, kernel_size=K, padding=1, dilation=2))
    ref2 = tcn_block_ref(x2, params, kernel_size=K, padding=1, dilation=2)
    assert out2.shape == ref2.shape
    np.testing.assert_allclose(np.asarray(out2), np.asarray(ref2), rtol=1e-3, atol=1e-3)

    # config 3: bf16 MXU operands (v6e/v7x fast path), f32 elementwise; loose tolerance.
    out3 = jax.block_until_ready(
        tcn_block(x1, params, kernel_size=K, padding=0, dilation=1, mxu_dtype=jnp.bfloat16))
    np.testing.assert_allclose(np.asarray(out3), np.asarray(ref1), rtol=5e-2, atol=5e-2)

    print("KERNEL_OK")
</pallas_src>

<mosaic_0001>
module attributes {stable_mosaic.version = 11 : i64} {
  func.func @tcn_block_kernel(%arg0: memref<1x256xf32, #tpu.memory_space<vmem>>, %arg1: memref<4x258xf32, #tpu.memory_space<vmem>>, %arg2: memref<4x256xf32, #tpu.memory_space<vmem>>, %arg3: memref<8x12xf32, #tpu.memory_space<vmem>>, %arg4: memref<8x1xf32, #tpu.memory_space<vmem>>, %arg5: memref<8x1xf32, #tpu.memory_space<vmem>>, %arg6: memref<8x1xf32, #tpu.memory_space<vmem>>, %arg7: memref<4x2x1xf32, #tpu.memory_space<vmem>>, %arg8: memref<8x256xf32, #tpu.memory_space<vmem>>) attributes {dimension_semantics = [], scalar_prefetch = 0 : i64, scratch_operands = 0 : i64, tpu.core_type = #tpu.core_type<tc>} {
    %c0 = arith.constant 0 : index
    %c0_0 = arith.constant 0 : index
    %0 = vector.load %arg1[%c0, %c0_0] : memref<4x258xf32, #tpu.memory_space<vmem>>, vector<4x256xf32>
    %c0_1 = arith.constant 0 : index
    %c1 = arith.constant 1 : index
    %1 = vector.load %arg1[%c0_1, %c1] : memref<4x258xf32, #tpu.memory_space<vmem>>, vector<4x256xf32>
    %c0_2 = arith.constant 0 : index
    %c2 = arith.constant 2 : index
    %2 = vector.load %arg1[%c0_2, %c2] : memref<4x258xf32, #tpu.memory_space<vmem>>, vector<4x256xf32>
    %3 = tpu.concatenate %0, %1, %2 in 0 : vector<4x256xf32>, vector<4x256xf32>, vector<4x256xf32> -> vector<12x256xf32>
    %c0_3 = arith.constant 0 : index
    %c0_4 = arith.constant 0 : index
    %4 = vector.load %arg3[%c0_3, %c0_4] : memref<8x12xf32, #tpu.memory_space<vmem>>, vector<8x12xf32>
    %cst = arith.constant dense<0.000000e+00> : vector<8x256xf32>
    %5 = tpu.matmul %4, %3, %cst {dimension_numbers = #tpu.dot_dimension_numbers<[1], [0], [0], [1], [0, 0, 1, 1], [], []>} : vector<8x12xf32>, vector<12x256xf32>, vector<8x256xf32> -> vector<8x256xf32>
    %c0_5 = arith.constant 0 : index
    %c0_6 = arith.constant 0 : index
    %6 = vector.load %arg0[%c0_5, %c0_6] : memref<1x256xf32, #tpu.memory_space<vmem>>, vector<1x256xf32>
    %7 = vector.broadcast %6 : vector<1x256xf32> to vector<8x256xf32>
    %8 = arith.mulf %5, %7 : vector<8x256xf32>
    %cst_7 = arith.constant dense<0.000000e+00> : vector<8xf32>
    %9 = vector.multi_reduction <add>, %8, %cst_7 [1] : vector<8x256xf32> to vector<8xf32>
    %10 = vector.shape_cast %9 : vector<8xf32> to vector<8x1xf32>
    %11 = arith.mulf %8, %8 : vector<8x256xf32>
    %cst_8 = arith.constant dense<0.000000e+00> : vector<8xf32>
    %12 = vector.multi_reduction <add>, %11, %cst_8 [1] : vector<8x256xf32> to vector<8xf32>
    %13 = vector.shape_cast %12 : vector<8xf32> to vector<8x1xf32>
    %cst_9 = arith.constant 0.0357142873 : f32
    %14 = vector.broadcast %cst_9 : f32 to vector<8x1xf32>
    %15 = arith.mulf %10, %14 : vector<8x1xf32>
    %cst_10 = arith.constant 0.0357142873 : f32
    %16 = vector.broadcast %cst_10 : f32 to vector<8x1xf32>
    %17 = arith.mulf %13, %16 : vector<8x1xf32>
    %18 = arith.mulf %15, %15 : vector<8x1xf32>
    %19 = arith.subf %17, %18 : vector<8x1xf32>
    %cst_11 = arith.constant 0.000000e+00 : f32
    %20 = vector.broadcast %cst_11 : f32 to vector<8x1xf32>
    %21 = arith.maximumf %19, %20 : vector<8x1xf32>
    %c0_12 = arith.constant 0 : index
    %c0_13 = arith.constant 0 : index
    %22 = vector.load %arg4[%c0_12, %c0_13] : memref<8x1xf32, #tpu.memory_space<vmem>>, vector<8x1xf32>
    %cst_14 = arith.constant 9.99999974E-6 : f32
    %23 = vector.broadcast %cst_14 : f32 to vector<8x1xf32>
    %24 = arith.addf %21, %23 : vector<8x1xf32>
    %25 = math.rsqrt %24 : vector<8x1xf32>
    %26 = arith.mulf %22, %25 : vector<8x1xf32>
    %c0_15 = arith.constant 0 : index
    %c0_16 = arith.constant 0 : index
    %27 = vector.load %arg5[%c0_15, %c0_16] : memref<8x1xf32, #tpu.memory_space<vmem>>, vector<8x1xf32>
    %28 = arith.mulf %15, %26 : vector<8x1xf32>
    %29 = arith.subf %27, %28 : vector<8x1xf32>
    %30 = vector.broadcast %26 : vector<8x1xf32> to vector<8x256xf32>
    %31 = arith.mulf %8, %30 : vector<8x256xf32>
    %32 = vector.broadcast %29 : vector<8x1xf32> to vector<8x256xf32>
    %33 = arith.addf %31, %32 : vector<8x256xf32>
    %cst_17 = arith.constant 0.000000e+00 : f32
    %34 = vector.broadcast %cst_17 : f32 to vector<8x256xf32>
    %35 = arith.cmpf ogt, %33, %34 : vector<8x256xf32>
    %c0_18 = arith.constant 0 : index
    %c0_19 = arith.constant 0 : index
    %36 = vector.load %arg6[%c0_18, %c0_19] : memref<8x1xf32, #tpu.memory_space<vmem>>, vector<8x1xf32>
    %37 = vector.broadcast %36 : vector<8x1xf32> to vector<8x256xf32>
    %38 = arith.mulf %37, %33 : vector<8x256xf32>
    %39 = arith.select %35, %33, %38 : vector<8x256xi1>, vector<8x256xf32>
    %c0_20 = arith.constant 0 : index
    %c0_21 = arith.constant 0 : index
    %40 = vector.load %arg2[%c0_20, %c0_21] : memref<4x256xf32, #tpu.memory_space<vmem>>, vector<4x256xf32>
    %41 = vector.shape_cast %40 : vector<4x256xf32> to vector<4x1x256xf32>
    %c0_22 = arith.constant 0 : index
    %c0_23 = arith.constant 0 : index
    %c0_24 = arith.constant 0 : index
    %42 = vector.load %arg7[%c0_22, %c0_23, %c0_24] : memref<4x2x1xf32, #tpu.memory_space<vmem>>, vector<4x2x1xf32>
    %43 = vector.broadcast %41 : vector<4x1x256xf32> to vector<4x2x256xf32>
    %44 = vector.broadcast %42 : vector<4x2x1xf32> to vector<4x2x256xf32>
    %45 = arith.mulf %43, %44 : vector<4x2x256xf32>
    %46 = vector.shape_cast %45 : vector<4x2x256xf32> to vector<8x256xf32>
    %47 = arith.addf %39, %46 : vector<8x256xf32>
    %c0_25 = arith.constant 0 : index
    %c0_26 = arith.constant 0 : index
    %48 = vector.load %arg8[%c0_25, %c0_26] : memref<8x256xf32, #tpu.memory_space<vmem>>, vector<8x256xf32>
    tpu.vector_store %arg8[%c0_25, %c0_26], %47 {strides = array<i32>} : memref<8x256xf32, #tpu.memory_space<vmem>>, vector<8x256xf32>,
    return
  }
}

</mosaic_0001>

<llo_original>
// kernel: tpu_custom_call.1
$region0: #{tpu_custom_call.1}
  #allocation0 [shape = 'u32[]', space=smem, size = 0x4, offset = 0x4, fixed_abs, tag = 'smem constant byte address 0x4 - core index']
  #allocation1 [shape = 'u32[144,128]{1,0:T(1,128)}', space=vmem, size = 0x12000, scoped, tag = 'internal scratch']
  %s0 = inlined_call_operand.vmem [shape: f32[1,256], index: 0, kind: input, shape index: {}]
  %s1 = inlined_call_operand.vmem [shape: f32[4,258], index: 1, kind: input, shape index: {}]
  %s2 = inlined_call_operand.vmem [shape: f32[4,256], index: 2, kind: input, shape index: {}]
  %s3 = inlined_call_operand.vmem [shape: f32[8,12], index: 3, kind: input, shape index: {}]
  %s4 = inlined_call_operand.vmem [shape: f32[8,1], index: 4, kind: input, shape index: {}]
  %s5 = inlined_call_operand.vmem [shape: f32[8,1], index: 5, kind: input, shape index: {}]
  %s6 = inlined_call_operand.vmem [shape: f32[8,1], index: 6, kind: input, shape index: {}]
  %s7 = inlined_call_operand.vmem [shape: f32[4,2,1], index: 7, kind: input, shape index: {}]
  %s8 = inlined_call_operand.hbm [shape: f32[8,256], index: 8, kind: output, shape index: {}]
  %s9 = sld [smem:[#allocation0]]
  $region42: #{tpu_custom_call.1} parent=0
    _
  %s11 = ssub.s32 1, %s9
  %s12 = scalar_select 0, %s11, %s9
  $region1: #{tpu_custom_call.1} parent=0
    #allocation2 [shape = 'u8[8192]{0}', space=vmem, size = 0x2000, scoped, tag = 'output window, operand 0, single buffered']
    #allocation3 [shape = 's32[1]{0}', space=sflag, size = 0x4, scoped, tag = 'scoped memory for tpu_custom_call.1']
    %13 = vsyncpa [#allocation3], 0
    // Predicated region
    $region2: #{tpu_custom_call.1} parent=1 // pred_check
      _
    $region3: #{tpu_custom_call.1} parent=1 // pred_check_branch
      %15 = sbr.rel (0) target = $region5
    $region4: #{tpu_custom_call.1} parent=1 // pred_region
      _
    $region5: #{tpu_custom_call.1} parent=1 // pred_fallthru
      _
    // Predicated region
    $region6: #{tpu_custom_call.1} parent=1 // pred_check
      _
    $region7: #{tpu_custom_call.1} parent=1 // pred_check_branch
      %17 = sbr.rel (0) target = $region9
    $region8: #{tpu_custom_call.1} parent=1 // pred_region
      _
    $region9: #{tpu_custom_call.1} parent=1 // pred_fallthru
      _
    // Predicated region
    $region10: #{tpu_custom_call.1} parent=1 // pred_check
      _
    $region11: #{tpu_custom_call.1} parent=1 // pred_check_branch
      %19 = sbr.rel (0) target = $region13
    $region12: #{tpu_custom_call.1} parent=1 // pred_region
      _
    $region13: #{tpu_custom_call.1} parent=1 // pred_fallthru
      _
    // Predicated region
    $region14: #{tpu_custom_call.1} parent=1 // pred_check
      _
    $region15: #{tpu_custom_call.1} parent=1 // pred_check_branch
      %21 = sbr.rel (0) target = $region17
    $region16: #{tpu_custom_call.1} parent=1 // pred_region
      _
    $region17: #{tpu_custom_call.1} parent=1 // pred_fallthru
      _
    // Predicated region
    $region18: #{tpu_custom_call.1} parent=1 // pred_check
      _
    $region19: #{tpu_custom_call.1} parent=1 // pred_check_branch
      %23 = sbr.rel (0) target = $region21
    $region20: #{tpu_custom_call.1} parent=1 // pred_region
      _
    $region21: #{tpu_custom_call.1} parent=1 // pred_fallthru
      _
    // Predicated region
    $region22: #{tpu_custom_call.1} parent=1 // pred_check
      _
    $region23: #{tpu_custom_call.1} parent=1 // pred_check_branch
      %25 = sbr.rel (0) target = $region25
    $region24: #{tpu_custom_call.1} parent=1 // pred_region
      _
    $region25: #{tpu_custom_call.1} parent=1 // pred_fallthru
      _
    // Predicated region
    $region26: #{tpu_custom_call.1} parent=1 // pred_check
      _
    $region27: #{tpu_custom_call.1} parent=1 // pred_check_branch
      %27 = sbr.rel (0) target = $region29
    $region28: #{tpu_custom_call.1} parent=1 // pred_region
      _
    $region29: #{tpu_custom_call.1} parent=1 // pred_fallthru
      _
    // Predicated region
    $region30: #{tpu_custom_call.1} parent=1 // pred_check
      _
    $region31: #{tpu_custom_call.1} parent=1 // pred_check_branch
      %29 = sbr.rel (0) target = $region33
    $region32: #{tpu_custom_call.1} parent=1 // pred_region
      _
    $region33: #{tpu_custom_call.1} parent=1 // pred_fallthru
      _
    %v30 = vld [vmem:[%s1] sm:$0xff]
    %v31 = vld [vmem:[%s1 + $0x8] sm:$0xf]
    %v33 = vcombine.high %v30, %v30
    %v36 = vcombine.low %v30, %v30
    %v37 = vcombine.low %v31, %v31
    %38 = vrot.lane.b32.xlu0 %v36, 127
    %v39 = vpop.permute.xlu0 %38
    %40 = vrot.lane.b32.xlu0 %v30, 127
    %v41 = vpop.permute.xlu0 %40
    %42 = vrot.lane.b32.xlu0 %v37, 127
    %v43 = vpop.permute.xlu0 %42
    %vm44 = vcmask 1039360
    %v45 = vsel %vm44, %v39, %v41
    %v46 = vsel %vm44, %v41, %v43
    %49 = vrot.lane.b32.xlu0 %v30, 126
    %v50 = vpop.permute.xlu0 %49
    %51 = vrot.lane.b32.xlu0 %v33, 126
    %v52 = vpop.permute.xlu0 %51
    %53 = vrot.lane.b32.xlu0 %v31, 126
    %v54 = vpop.permute.xlu0 %53
    %vm55 = vcmask 1031168
    %v56 = vsel %vm55, %v50, %v52
    %v57 = vsel %vm55, %v52, %v54
    %vm58 = vcmask 1043456
    %v59 = vsel %vm58, %v30, %v45
    %v60 = vsel %vm58, %v33, %v46
    %v61 = vld [vmem:[%s3] sm:$0xff]
    %vm62 = vcmask 97280
    %v64 = vsel %vm62, %v61, 0
    %v66 = vsel %vm58, %v56, 0
    %v68 = vsel %vm58, %v57, 0
    %70 = vmatprep.subr.mxu0 0.0
    %71 = vmatpush1.msra.mxu0 0.0
    %72 = vmatprep.subr.mxu0 0.0
    %73 = vmatpush1.msra.mxu0 0.0
    %74 = vmatprep.subr.mxu0 0.0
    %75 = vmatpush1.msra.mxu0 0.0
    %76 = vmatprep.subr.mxu0 0.0
    %77 = vmatpush1.msra.mxu0 0.0
    %78 = vmatprep.subr.mxu0 0.0
    %79 = vmatpush1.msra.mxu0 0.0
    %80 = vmatprep.subr.mxu0 0.0
    %81 = vmatpush1.msra.mxu0 0.0
    %82 = vmatprep.subr.mxu0 0.0
    %83 = vmatpush1.msra.mxu0 0.0
    %84 = vmatprep.subr.mxu0 0.0
    %85 = vmatpush1.msra.mxu0 0.0
    %86 = vmatprep.subr.mxu0 0.0
    %87 = vmatpush1.msra.mxu0 0.0
    %88 = vmatprep.subr.mxu0 0.0
    %89 = vmatpush1.msra.mxu0 0.0
    %90 = vmatprep.subr.mxu0 0.0
    %91 = vmatpush1.msra.mxu0 0.0
    %92 = vmatprep.subr.mxu0 0.0
    %93 = vmatpush1.msra.mxu0 0.0
    %94 = vmatprep.subr.mxu0 0.0
    %95 = vmatpush1.msra.mxu0 0.0
    %96 = vmatprep.subr.mxu0 0.0
    %97 = vmatpush1.msra.mxu0 0.0
    %98 = vmatprep.subr.mxu0 %v68
    %99 = vmatpush1.msra.mxu0 %v66
    %100 = vmatprep.subr.mxu0 %v60
    %101 = vmatpush1.msra.mxu0 %v59
    %102 = vmatprep.subr.mxu0 0.0
    %103 = vmatpush2.msra.mxu0 0.0
    %104 = vmatprep.subr.mxu0 0.0
    %105 = vmatpush2.msra.mxu0 0.0
    %106 = vmatprep.subr.mxu0 0.0
    %107 = vmatpush2.msra.mxu0 0.0
    %108 = vmatprep.subr.mxu0 0.0
    %109 = vmatpush2.msra.mxu0 0.0
    %110 = vmatprep.subr.mxu0 0.0
    %111 = vmatpush2.msra.mxu0 0.0
    %112 = vmatprep.subr.mxu0 0.0
    %113 = vmatpush2.msra.mxu0 0.0
    %114 = vmatprep.subr.mxu0 0.0
    %115 = vmatpush2.msra.mxu0 0.0
    %116 = vmatprep.subr.mxu0 0.0
    %117 = vmatpush2.msra.mxu0 0.0
    %118 = vmatprep.subr.mxu0 0.0
    %119 = vmatpush2.msra.mxu0 0.0
    %120 = vmatprep.subr.mxu0 0.0
    %121 = vmatpush2.msra.mxu0 0.0
    %122 = vmatprep.subr.mxu0 0.0
    %123 = vmatpush2.msra.mxu0 0.0
    %124 = vmatprep.subr.mxu0 0.0
    %125 = vmatpush2.msra.mxu0 0.0
    %126 = vmatprep.subr.mxu0 0.0
    %127 = vmatpush2.msra.mxu0 0.0
    %128 = vmatprep.subr.mxu0 0.0
    %129 = vmatpush2.msra.mxu0 0.0
    %130 = vmatprep.subr.mxu0 0.0
    %131 = vmatpush2.msra.mxu0 0.0
    %132 = vmatprep.subr.mxu0 0.0
    %133 = vmatpush2.msra.mxu0 0.0
    %134 = vmatprep.mubr.f32.mxu0 0.0
    %135 = vmatmul.mubr.f32.gmra.mxu0 %v64
    %v136 = vpop.f32.mrf.mxu0
    %v137 = vadd.f32 0.0, %v136
    %v138 = vpop.f32.mrf.mxu0
    %v139 = vadd.f32 0.0, %v138
    %140 = vdwg.mxu0
    %v141 = vld [vmem:[%s0] sm:$0x3]
    %v143 = vlaneseq
    %v144 = vshrl.u32 %v143, 7
    %v145 = vsub.s32 0, %v144
    %v146 = vrot.slane %v141, %v145
    %v147 = vlaneseq
    %v148 = vshrl.u32 %v147, 7
    %v149 = vsub.s32 1, %v148
    %v150 = vrot.slane %v141, %v149
    %v153 = vmul.f32 %v137, %v146
    %v154 = vmul.f32 %v139, %v150
    %v155 = vadd.f32 %v153, %v154
    %156 = vadd.xlane.f32.xlu0 %v155
    %v157 = vpop.xlane.xlu0 %156
    %v158 = vmul.f32 %v153, %v153
    %v159 = vmul.f32 %v154, %v154
    %v160 = vadd.f32 %v158, %v159
    %161 = vadd.xlane.f32.xlu0 %v160
    %v162 = vpop.xlane.xlu0 %161
    %v163 = vmul.f32 %v157, 0.035714287
    %v164 = vmul.f32 %v162, 0.035714287
    %v165 = vmul.f32 %v163, %v163
    %v166 = vsub.f32 %v164, %v165
    %v167 = vmax.f32 %v166, 0.0
    %v168 = vld [vmem:[%s4] sm:$0xff]
    %v169 = vadd.f32 %v167, 1e-05
    %v170 = vrsqrt.pop %v169
    %v171 = vmul.f32 %v168, %v170
    %v172 = vld [vmem:[%s5] sm:$0xff]
    %v173 = vmul.f32 %v163, %v171
    %v174 = vsub.f32 %v172, %v173
    %176 = vset.pattern.permute.xlu0 0
    %177 = vperm.xlu0 %176, %v171
    %v178 = vpop.permute.xlu0 %177
    %v180 = vmul.f32 %v153, %v178
    %v181 = vmul.f32 %v154, %v178
    %183 = vset.pattern.permute.xlu0 0
    %184 = vperm.xlu0 %183, %v174
    %v185 = vpop.permute.xlu0 %184
    %v187 = vadd.f32 %v180, %v185
    %v188 = vadd.f32 %v181, %v185
    %vm189 = vcmp.gt.f32.partialorder %v187, 0.0
    %vm190 = vcmp.gt.f32.partialorder %v188, 0.0
    %v191 = vld [vmem:[%s6] sm:$0xff]
    %193 = vset.pattern.permute.xlu0 0
    %194 = vperm.xlu0 %193, %v191
    %v195 = vpop.permute.xlu0 %194
    %v197 = vmul.f32 %v195, %v187
    %v198 = vmul.f32 %v195, %v188
    %v199 = vsel %vm189, %v187, %v197
    %v200 = vsel %vm190, %v188, %v198
    %v201 = vld [vmem:[%s2] sm:$0xff]
    %v204 = vunpack.c.l.s4 1966171168
    %v205 = vunpack.c.0.s8 %v204
    %v206 = vlaneseq
    %v207 = vshrl.u32 %v206, 7
    %v208 = vsub.s32 %v205, %v207
    %v209 = vrot.slane %v201, %v208
    %v210 = vcombine.high %v209, %v209
    %v212 = vunpack.c.l.s4 1966171168
    %v213 = vunpack.c.0.s8 %v212
    %v214 = vlaneseq
    %v215 = vshrl.u32 %v214, 7
    %v216 = vsub.s32 %v213, %v215
    %v217 = vrot.slane %v209, %v216
    %v219 = vunpack.c.l.s4 1966171168
    %v220 = vunpack.c.0.s8 %v219
    %v221 = vlaneseq
    %v222 = vshrl.u32 %v221, 7
    %v223 = vsub.s32 %v220, %v222
    %v224 = vrot.slane %v210, %v223
    %v225 = vcombine.high %v217, %v217
    %v226 = vcombine.high %v224, %v224
    %v227 = vld [vmem:[%s7] sm:$0x3]
    %v228 = vld [vmem:[%s7 + $0x2] sm:$0x3]
    %v229 = vld [vmem:[%s7 + $0x4] sm:$0x3]
    %v230 = vld [vmem:[%s7 + $0x6] sm:$0x3]
    %v231 = vlaneseq
    %v232 = vshrl.u32 %v231, 7
    %v233 = vsub.s32 0, %v232
    %v234 = vrot.slane %v217, %v233
    %v235 = vlaneseq
    %v236 = vshrl.u32 %v235, 7
    %v237 = vsub.s32 1, %v236
    %v238 = vrot.slane %v217, %v237
    %v239 = vlaneseq
    %v240 = vshrl.u32 %v239, 7
    %v241 = vsub.s32 0, %v240
    %v242 = vrot.slane %v224, %v241
    %v243 = vlaneseq
    %v244 = vshrl.u32 %v243, 7
    %v245 = vsub.s32 1, %v244
    %v246 = vrot.slane %v224, %v245
    %v247 = vlaneseq
    %v248 = vshrl.u32 %v247, 7
    %v249 = vsub.s32 0, %v248
    %v250 = vrot.slane %v225, %v249
    %v251 = vlaneseq
    %v252 = vshrl.u32 %v251, 7
    %v253 = vsub.s32 1, %v252
    %v254 = vrot.slane %v225, %v253
    %v255 = vlaneseq
    %v256 = vshrl.u32 %v255, 7
    %v257 = vsub.s32 0, %v256
    %v258 = vrot.slane %v226, %v257
    %v259 = vlaneseq
    %v260 = vshrl.u32 %v259, 7
    %v261 = vsub.s32 1, %v260
    %v262 = vrot.slane %v226, %v261
    %272 = vset.pattern.permute.xlu0 0
    %273 = vperm.xlu0 %272, %v227
    %v274 = vpop.permute.xlu0 %273
    %277 = vset.pattern.permute.xlu0 0
    %278 = vperm.xlu0 %277, %v228
    %v279 = vpop.permute.xlu0 %278
    %282 = vset.pattern.permute.xlu0 0
    %283 = vperm.xlu0 %282, %v229
    %v284 = vpop.permute.xlu0 %283
    %287 = vset.pattern.permute.xlu0 0
    %288 = vperm.xlu0 %287, %v230
    %v289 = vpop.permute.xlu0 %288
    %v291 = vmul.f32 %v234, %v274
    %v292 = vmul.f32 %v238, %v274
    %v293 = vmul.f32 %v242, %v279
    %v294 = vmul.f32 %v246, %v279
    %v295 = vmul.f32 %v250, %v284
    %v296 = vmul.f32 %v254, %v284
    %v297 = vmul.f32 %v258, %v289
    %v298 = vmul.f32 %v262, %v289
    %v307 = vcombine.low %v291, %v292
    %v309 = vunpack.c.l.s4 1983009808
    %v310 = vunpack.c.0.s8 %v309
    %v311 = vlaneseq
    %v312 = vshrl.u32 %v311, 7
    %v313 = vsub.s32 %v310, %v312
    %v314 = vrot.slane %v307, %v313
    %v315 = vcombine.low %v293, %v294
    %v317 = vunpack.c.l.s4 1983009808
    %v318 = vunpack.c.0.s8 %v317
    %v319 = vlaneseq
    %v320 = vshrl.u32 %v319, 7
    %v321 = vsub.s32 %v318, %v320
    %v322 = vrot.slane %v315, %v321
    %v323 = vcombine.low %v295, %v296
    %v325 = vunpack.c.l.s4 1983009808
    %v326 = vunpack.c.0.s8 %v325
    %v327 = vlaneseq
    %v328 = vshrl.u32 %v327, 7
    %v329 = vsub.s32 %v326, %v328
    %v330 = vrot.slane %v323, %v329
    %v331 = vcombine.low %v297, %v298
    %v333 = vunpack.c.l.s4 1983009808
    %v334 = vunpack.c.0.s8 %v333
    %v335 = vlaneseq
    %v336 = vshrl.u32 %v335, 7
    %v337 = vsub.s32 %v334, %v336
    %v338 = vrot.slane %v331, %v337
    %v339 = vcombine.low %v314, %v322
    %v340 = vcombine.low %v330, %v338
    %v342 = vunpack.c.l.s4 1983009808
    %v343 = vunpack.c.0.s8 %v342
    %v344 = vlaneseq
    %v345 = vshrl.u32 %v344, 7
    %v346 = vsub.s32 %v343, %v345
    %v347 = vrot.slane %v339, %v346
    %v349 = vunpack.c.l.s4 1983009808
    %v350 = vunpack.c.0.s8 %v349
    %v351 = vlaneseq
    %v352 = vshrl.u32 %v351, 7
    %v353 = vsub.s32 %v350, %v352
    %v354 = vrot.slane %v340, %v353
    %v355 = vcombine.low %v347, %v354
    %v356 = vcombine.high %v347, %v354
    %v359 = vadd.f32 %v199, %v355
    %v360 = vadd.f32 %v200, %v356
    %361 = vst [vmem:[#allocation2] sm:$0xff] %v359
    %362 = vst [vmem:[#allocation2 + $0x8] sm:$0xff] %v360
    // Predicated region
    $region34: #{tpu_custom_call.1} parent=1 // pred_check
      _
    $region35: #{tpu_custom_call.1} parent=1 // pred_check_branch
      %364 = sbr.rel (0) target = $region37
    $region36: #{tpu_custom_call.1} parent=1 // pred_region
      %s366 = ssub.s32 256, 256
      %367 = vsyncadd [#allocation3], %s366
      %s369 = sshll.u32 [#allocation2], 4
      %s370 = int_to_ptr.vmem [resolvable:$true] %s369
      %372 = dma.vmem_to_hbm [thread:$0]  %s370, 256, %s8, [#allocation3]
    $region37: #{tpu_custom_call.1} parent=1 // pred_fallthru
      _
    // Predicated region
    $region38: #{tpu_custom_call.1} parent=1 // pred_check
      _
    $region39: #{tpu_custom_call.1} parent=1 // pred_check_branch
      %374 = sbr.rel (0) target = $region41
    $region40: #{tpu_custom_call.1} parent=1 // pred_region
      %375 = dma.done [#allocation3], 256
    $region41: #{tpu_custom_call.1} parent=1 // pred_fallthru
      _
    %376 = vsyncpa [#allocation3], 1

</llo_original>
